<compile_context>
chip_gen: v5e
topology: v5e:2x2
jax: 0.10.0
libtpu: 0.0.40
codegen_flags: <defaults>
</compile_context>

<pallas_src>
import math

import jax
import jax.numpy as jnp
from jax.experimental import pallas as pl
from jax.experimental.pallas import tpu as pltpu


def _round_up(x, m):
    return ((x + m - 1) // m) * m


def _cdiv(a, b):
    return -(-a // b)


def _vmem_capacity_bytes():
    """Physical VMEM of the current chip; conservative fallback (v7x = 64 MiB)."""
    try:
        info = pltpu.get_tpu_info()
        for attr in ("vmem_capacity_bytes", "vmem_bytes", "vmem_size_bytes"):
            v = getattr(info, attr, None)
            if v:
                return int(v)
    except Exception:
        pass
    return 64 * 1024 * 1024


def _vmem_estimate(tm, tf, d_model, op_bytes, out_bytes, use_scratch):
    """Rough per-call VMEM footprint: double-buffered blocks + acc + f32 h."""
    x_blk = tm * d_model * op_bytes
    w1_blk = d_model * tf * op_bytes
    w2_blk = tf * d_model * op_bytes
    b_blk = d_model * 4
    out_blk = tm * d_model * out_bytes
    dbuf = 2 * (x_blk + w1_blk + w2_blk + b_blk + out_blk)
    acc = tm * d_model * 4 if use_scratch else 0
    h = tm * tf * 4 + tm * tf * op_bytes  # f32 intermediate + downcast copy
    return dbuf + acc + h


# ------------------------------- kernels ----------------------------------- #
# Per (row tile i, d_ff chunk j):
#   h_j    = x_i @ W1^T[:, chunk j]            (f32 on the MXU)
#   acc_i += h_j @ W2^T[chunk j, :]            (f32 accumulate)
# acc_i is initialized with the pre-folded bias b' = b1 @ W2^T + b2 at j == 0.


def _ffn_kernel_f32_out(x_ref, w1t_ref, w2t_ref, bfused_ref, o_ref):
    """f32 output: accumulate directly into the VMEM-resident output block."""
    j = pl.program_id(1)

    @pl.when(j == 0)
    def _():
        o_ref[...] = jnp.broadcast_to(bfused_ref[...], o_ref.shape)

    h = jnp.dot(x_ref[...], w1t_ref[...], preferred_element_type=jnp.float32)
    o_ref[...] += jnp.dot(
        h.astype(x_ref.dtype), w2t_ref[...], preferred_element_type=jnp.float32
    )


def _ffn_kernel_acc(x_ref, w1t_ref, w2t_ref, bfused_ref, o_ref, acc_ref):
    """Non-f32 output: f32 scratch accumulator, single cast on writeback."""
    j = pl.program_id(1)

    @pl.when(j == 0)
    def _():
        acc_ref[...] = jnp.broadcast_to(bfused_ref[...], acc_ref.shape)

    h = jnp.dot(x_ref[...], w1t_ref[...], preferred_element_type=jnp.float32)
    acc_ref[...] += jnp.dot(
        h.astype(x_ref.dtype), w2t_ref[...], preferred_element_type=jnp.float32
    )

    @pl.when(j == pl.num_programs(1) - 1)
    def _():
        o_ref[...] = acc_ref[...].astype(o_ref.dtype)


# ------------------------------- wrapper ----------------------------------- #


def feed_forward(x, w1, b1, w2, b2, *, row_tile=1024, ff_tile=512,
                 cast_operands_to_bf16=False):
    """Fused FeedForward: linear_2(dropout(linear_1(x))); dropout = identity (eval).

    x : (..., d_model)
    w1: (d_ff, d_model), b1: (d_ff,)      -- nn.Linear(d_model, d_ff) layout
    w2: (d_model, d_ff), b2: (d_model,)   -- nn.Linear(d_ff, d_model) layout
    """
    # TODO(synk): training-mode dropout (pltpu.prng_seed + stateful_bernoulli)
    # is not implemented; it cannot match torch's RNG stream anyway.
    orig_shape = x.shape
    d_model = orig_shape[-1]
    d_ff = w1.shape[0]
    out_dtype = x.dtype

    x2d = x.reshape(-1, d_model)
    rows = x2d.shape[0]

    op_dtype = jnp.bfloat16 if cast_operands_to_bf16 else x2d.dtype
    op_bytes = jnp.dtype(op_dtype).itemsize
    out_bytes = jnp.dtype(out_dtype).itemsize
    # dtype-dependent sublane multiple: 8 (f32), 16 (bf16), 32 (int8/fp8).
    sub = max(8, 32 // op_bytes)

    # --- row tiling: balanced tiles (minimal padding); >= 2 row tiles when the
    #     shape allows so v7x can shard the "parallel" axis across both TCs. ---
    n_row_tiles = _cdiv(rows, row_tile)
    if rows >= 2 * sub:
        n_row_tiles = max(n_row_tiles, 2)
    tm = _round_up(_cdiv(rows, n_row_tiles), sub)
    n_row_tiles = _cdiv(rows, tm)
    rows_p = n_row_tiles * tm

    # --- d_ff tiling: multiples of 256 to match v6e/v7x's 256x256 MXU. ---
    lane_mult = 256 if d_ff >= 256 else 128
    tf = _round_up(min(ff_tile, _round_up(d_ff, lane_mult)), lane_mult)

    # --- per-generation VMEM budget; shrink tiles if the estimate won't fit. ---
    use_scratch = out_dtype != jnp.float32
    vmem_budget = min(int(_vmem_capacity_bytes() * 0.85), 112 * 1024 * 1024)
    while (_vmem_estimate(tm, tf, d_model, op_bytes, out_bytes, use_scratch)
           > vmem_budget and tf > lane_mult):
        tf = max(lane_mult, _round_up(tf // 2, lane_mult))
    while (_vmem_estimate(tm, tf, d_model, op_bytes, out_bytes, use_scratch)
           > vmem_budget and tm > sub):
        tm = max(sub, _round_up(tm // 2, sub))
        n_row_tiles = _cdiv(rows, tm)
        rows_p = n_row_tiles * tm

    d_ff_p = _round_up(d_ff, tf)

    if rows_p != rows:
        x2d = jnp.pad(x2d, ((0, rows_p - rows), (0, 0)))

    # Pre-transpose weights once (lane-dense MXU operands, no in-kernel
    # transpose) and fold b1 through linear_2: b' = b1 @ W2^T + b2.  Exact at
    # inference because there is no nonlinearity between the two linears.
    w1t = w1.T                                            # (d_model, d_ff)
    w2t = w2.T                                            # (d_ff, d_model)
    b_fused = (
        jnp.dot(b1.astype(jnp.float32), w2t.astype(jnp.float32))
        + b2.astype(jnp.float32)
    ).reshape(1, d_model)

    if d_ff_p != d_ff:
        # Zero-padded d_ff columns/rows contribute exactly 0 to the output.
        w1t = jnp.pad(w1t, ((0, 0), (0, d_ff_p - d_ff)))
        w2t = jnp.pad(w2t, ((0, d_ff_p - d_ff), (0, 0)))

    x2d = x2d.astype(op_dtype)
    w1t = w1t.astype(op_dtype)
    w2t = w2t.astype(op_dtype)

    grid = (n_row_tiles, d_ff_p // tf)

    if use_scratch:
        kernel = _ffn_kernel_acc
        scratch_shapes = [pltpu.VMEM((tm, d_model), jnp.float32)]
    else:
        kernel = _ffn_kernel_f32_out
        scratch_shapes = []

    out = pl.pallas_call(
        kernel,
        out_shape=jax.ShapeDtypeStruct((rows_p, d_model), out_dtype),
        grid_spec=pltpu.PrefetchScalarGridSpec(
            num_scalar_prefetch=0,
            grid=grid,
            in_specs=[
                pl.BlockSpec((tm, d_model), lambda i, j: (i, 0)),   # x rows
                pl.BlockSpec((d_model, tf), lambda i, j: (0, j)),   # W1^T chunk
                pl.BlockSpec((tf, d_model), lambda i, j: (j, 0)),   # W2^T chunk
                pl.BlockSpec((1, d_model), lambda i, j: (0, 0)),    # fused bias
            ],
            out_specs=pl.BlockSpec((tm, d_model), lambda i, j: (i, 0)),
            scratch_shapes=scratch_shapes,
        ),
        compiler_params=pltpu.CompilerParams(
            # Rows parallel (megacore shardable on v7x); d_ff is the reduction.
            dimension_semantics=("parallel", "arbitrary"),
            vmem_limit_bytes=vmem_budget,
        ),
    )(x2d, w1t, w2t, b_fused)

    out = out[:rows]
    return out.reshape(orig_shape)


def _reference(x, w1, b1, w2, b2):
    h = jnp.einsum("...i,fi->...f", x, w1) + b1
    return jnp.einsum("...f,of->...o", h, w2) + b2


if __name__ == "__main__":
    key = jax.random.PRNGKey(0)
    k1, k2, k3, k4, k5 = jax.random.split(key, 5)

    batch, seq, d_model, d_ff = 2, 8, 32, 64

    x = jax.random.normal(k1, (batch, seq, d_model), dtype=jnp.float32)

    # nn.Linear default init: U(-1/sqrt(fan_in), 1/sqrt(fan_in))
    lim1 = 1.0 / math.sqrt(d_model)
    w1 = jax.random.uniform(k2, (d_ff, d_model), jnp.float32, -lim1, lim1)
    b1 = jax.random.uniform(k3, (d_ff,), jnp.float32, -lim1, lim1)
    lim2 = 1.0 / math.sqrt(d_ff)
    w2 = jax.random.uniform(k4, (d_model, d_ff), jnp.float32, -lim2, lim2)
    b2 = jax.random.uniform(k5, (d_model,), jnp.float32, -lim2, lim2)

    ref = _reference(x, w1, b1, w2, b2)

    # f32 path (accumulates directly into the output block).
    out = feed_forward(x, w1, b1, w2, b2)
    out = jax.block_until_ready(out)
    assert out.shape == x.shape
    assert jnp.allclose(out, ref, atol=2e-5, rtol=1e-5), "f32 mismatch vs reference"

    # bf16 path (exercises the f32 scratch-accumulator variant).
    out_bf16 = feed_forward(
        x.astype(jnp.bfloat16), w1.astype(jnp.bfloat16), b1.astype(jnp.bfloat16),
        w2.astype(jnp.bfloat16), b2.astype(jnp.bfloat16))
    out_bf16 = jax.block_until_ready(out_bf16)
    assert out_bf16.shape == x.shape and out_bf16.dtype == jnp.bfloat16
    assert jnp.allclose(out_bf16.astype(jnp.float32), ref, atol=0.12, rtol=0.05), \
        "bf16 mismatch vs reference"

    print("KERNEL_OK")
</pallas_src>

<mosaic_0001>
module attributes {stable_mosaic.version = 11 : i64} {
  func.func @_ffn_kernel_f32_out(%arg0: i32, %arg1: i32, %arg2: memref<8x32xf32, #tpu.memory_space<vmem>>, %arg3: memref<32x128xf32, #tpu.memory_space<vmem>>, %arg4: memref<128x32xf32, #tpu.memory_space<vmem>>, %arg5: memref<1x32xf32, #tpu.memory_space<vmem>>, %arg6: memref<8x32xf32, #tpu.memory_space<vmem>>) attributes {dimension_semantics = [#tpu.dimension_semantics<parallel>, #tpu.dimension_semantics<arbitrary>], iteration_bounds = array<i64: 2, 1>, scalar_prefetch = 0 : i64, scratch_operands = 0 : i64, tpu.core_type = #tpu.core_type<tc>, window_params = [{transform_indices = @transform_0, window_bounds = array<i64: 8, 32>}, {transform_indices = @transform_1, window_bounds = array<i64: 32, 128>}, {transform_indices = @transform_2, window_bounds = array<i64: 128, 32>}, {pipeline_mode = #tpu.pipeline_mode<synchronous>, transform_indices = @transform_3, window_bounds = array<i64: 1, 32>}, {transform_indices = @transform_4, window_bounds = array<i64: 8, 32>}]} {
    %c0_i32 = arith.constant 0 : i32
    %0 = arith.cmpi eq, %arg1, %c0_i32 : i32
    %1 = arith.extui %0 : i1 to i32
    %c0_i32_0 = arith.constant 0 : i32
    %2 = arith.cmpi ne, %1, %c0_i32_0 : i32
    scf.if %2 {
      %c0_11 = arith.constant 0 : index
      %c0_12 = arith.constant 0 : index
      %11 = vector.load %arg5[%c0_11, %c0_12] : memref<1x32xf32, #tpu.memory_space<vmem>>, vector<1x32xf32>
      %12 = vector.shape_cast %11 : vector<1x32xf32> to vector<1x32xf32>
      %13 = vector.broadcast %12 : vector<1x32xf32> to vector<8x32xf32>
      %c0_13 = arith.constant 0 : index
      %c0_14 = arith.constant 0 : index
      %14 = vector.load %arg6[%c0_13, %c0_14] : memref<8x32xf32, #tpu.memory_space<vmem>>, vector<8x32xf32>
      tpu.vector_store %arg6[%c0_13, %c0_14], %13 {strides = array<i32>} : memref<8x32xf32, #tpu.memory_space<vmem>>, vector<8x32xf32>,
    } else {
    }
    %c0 = arith.constant 0 : index
    %c0_1 = arith.constant 0 : index
    %3 = vector.load %arg2[%c0, %c0_1] : memref<8x32xf32, #tpu.memory_space<vmem>>, vector<8x32xf32>
    %c0_2 = arith.constant 0 : index
    %c0_3 = arith.constant 0 : index
    %4 = vector.load %arg3[%c0_2, %c0_3] : memref<32x128xf32, #tpu.memory_space<vmem>>, vector<32x128xf32>
    %cst = arith.constant dense<0.000000e+00> : vector<8x128xf32>
    %5 = tpu.matmul %3, %4, %cst {dimension_numbers = #tpu.dot_dimension_numbers<[1], [0], [0], [1], [0, 0, 1, 1], [], []>} : vector<8x32xf32>, vector<32x128xf32>, vector<8x128xf32> -> vector<8x128xf32>
    %c0_4 = arith.constant 0 : index
    %c0_5 = arith.constant 0 : index
    %6 = vector.load %arg6[%c0_4, %c0_5] : memref<8x32xf32, #tpu.memory_space<vmem>>, vector<8x32xf32>
    %c0_6 = arith.constant 0 : index
    %c0_7 = arith.constant 0 : index
    %7 = vector.load %arg4[%c0_6, %c0_7] : memref<128x32xf32, #tpu.memory_space<vmem>>, vector<128x32xf32>
    %cst_8 = arith.constant dense<0.000000e+00> : vector<8x32xf32>
    %8 = tpu.matmul %5, %7, %cst_8 {dimension_numbers = #tpu.dot_dimension_numbers<[1], [0], [0], [1], [0, 0, 1, 1], [], []>} : vector<8x128xf32>, vector<128x32xf32>, vector<8x32xf32> -> vector<8x32xf32>
    %9 = arith.addf %6, %8 : vector<8x32xf32>
    %c0_9 = arith.constant 0 : index
    %c0_10 = arith.constant 0 : index
    %10 = vector.load %arg6[%c0_9, %c0_10] : memref<8x32xf32, #tpu.memory_space<vmem>>, vector<8x32xf32>
    tpu.vector_store %arg6[%c0_9, %c0_10], %9 {strides = array<i32>} : memref<8x32xf32, #tpu.memory_space<vmem>>, vector<8x32xf32>,
    return
  }
  func.func @transform_0(%arg0: i32, %arg1: i32) -> (i32, i32) {
    %c0_i32 = arith.constant 0 : i32
    %c0_i32_0 = arith.constant 0 : i32
    return %arg0, %c0_i32 : i32, i32
  }
  func.func @transform_1(%arg0: i32, %arg1: i32) -> (i32, i32) {
    %c0_i32 = arith.constant 0 : i32
    %c0_i32_0 = arith.constant 0 : i32
    return %c0_i32, %arg1 : i32, i32
  }
  func.func @transform_2(%arg0: i32, %arg1: i32) -> (i32, i32) {
    %c0_i32 = arith.constant 0 : i32
    %c0_i32_0 = arith.constant 0 : i32
    return %arg1, %c0_i32 : i32, i32
  }
  func.func @transform_3(%arg0: i32, %arg1: i32) -> (i32, i32) {
    %c0_i32 = arith.constant 0 : i32
    %c0_i32_0 = arith.constant 0 : i32
    %c0_i32_1 = arith.constant 0 : i32
    return %c0_i32, %c0_i32_0 : i32, i32
  }
  func.func @transform_4(%arg0: i32, %arg1: i32) -> (i32, i32) {
    %c0_i32 = arith.constant 0 : i32
    %c0_i32_0 = arith.constant 0 : i32
    return %arg0, %c0_i32 : i32, i32
  }
}

</mosaic_0001>

<llo_original>
// kernel: tpu_custom_call.1
$region0: #{tpu_custom_call.1}
  #allocation0 [shape = 'u32[]', space=smem, size = 0x4, offset = 0x4, fixed_abs, tag = 'smem constant byte address 0x4 - core index']
  #allocation1 [shape = 'u32[72,128]{1,0:T(1,128)}', space=vmem, size = 0x9000, scoped, tag = 'internal scratch']
  %s0 = inlined_call_operand.vmem [shape: f32[16,32], index: 0, kind: input, shape index: {}]
  %s1 = inlined_call_operand.vmem [shape: f32[32,128], index: 1, kind: input, shape index: {}]
  %s2 = inlined_call_operand.vmem [shape: f32[128,32], index: 2, kind: input, shape index: {}]
  %s3 = inlined_call_operand.vmem [shape: f32[1,32], index: 3, kind: input, shape index: {}]
  %s4 = inlined_call_operand.hbm [shape: f32[16,32], index: 4, kind: output, shape index: {}]
  %s5 = sld [smem:[#allocation0]]
  $region53: #{tpu_custom_call.1} parent=0
    _
  %s7 = ssub.s32 1, %s5
  %s8 = scalar_select 0, %s7, %s5
  $region1: #{tpu_custom_call.1} parent=0
    #allocation2 [shape = 'u8[8192]{0}', space=vmem, size = 0x2000, scoped, tag = 'output window, operand 0']
    #allocation3 [shape = 's32[2]{0}', space=sflag, size = 0x8, scoped, tag = 'scoped memory for tpu_custom_call.1']
    %9 = vsyncpa [#allocation3], 0
    %s10 = scalar_lea.sflag [#allocation3], 1
    %11 = vsyncpa %s10, 0
    loop: start=0, step=1, limit=4
    $region2: #{tpu_custom_call.1} parent=1 // loop_pre_header
      _
    $region3: #{tpu_custom_call.1} parent=1 // loop_header
      %s13 = sphi 0, %s17
      %p14 = scmp.ge.s32.totalorder %s13, 4
      %s20 = sphi 0, %s32
      %s21 = sphi 0, %s28
      %s22 = sphi 0, %s20
      %s23 = sphi 0, %s21
      %s24 = sphi 0, %s22
      %s25 = sphi 0, %s23
      %s35 = sphi 0, %s37
      %s38 = sphi 0, %s35
      %s39 = sphi 0, %s38
      %s55 = sphi 0, %s39
      %s61 = sphi 0, %s63
      %s64 = sphi 0, %s61
      %s65 = sphi 0, %s64
      %s81 = sphi 0, %s65
      %s87 = sphi 0, %s89
      %s90 = sphi 0, %s87
      %s91 = sphi 0, %s90
      %s107 = sphi 0, %s91
      %s111 = sphi 0, %s111
      %s113 = sphi 0, %s111
      %s114 = sphi 0, %s113
      %s128 = sphi 0, %s114
      %s134 = sphi 0, %s136
      %s137 = sphi 0, %s134
      %s138 = sphi 0, %s137
      %s154 = sphi 0, %s138
    $region4: #{tpu_custom_call.1} parent=1 // loop_header_branch
      %16 = sbr.rel (%p14) target = $region8
    $region5: #{tpu_custom_call.1} parent=1 // loop_body
      %s18 = ssub.s32 %s13, 1
      %s19 = ssub.s32 %s13, 2
      %s26 = sadd.s32 1, %s21
      %p27 = scmp.ge.s32.totalorder %s26, 1
      %s28 = scalar_select %p27, 0, %s26
      %s29 = sadd.s32 1, %s20
      %s30 = scalar_select %p27, %s29, %s20
      %p31 = scmp.ge.s32.totalorder %s30, 2
      %s32 = scalar_select %p31, 0, %s30
      %s33 = ssub.s32 %s20, %s32
      %p34 = scmp.eq.s32.totalorder %s33, 0
      %s36 = sadd.s32 %s35, 1
      %s37 = scalar_select %p34, %s35, %s36
      %p40 = pneg %p34
      %p41 = scmp.eq.s32.totalorder %s13, 1
      %p42 = por %p40, %p41
      %p43 = scmp.ne.s32.totalorder %s35, %s38
      %p44 = scmp.eq.s32.totalorder %s13, 0
      %p45 = por %p43, %p44
      %p46 = scmp.ne.s32.totalorder %s35, %s38
      %p47 = scmp.eq.s32.totalorder %s18, 1
      %p48 = por %p46, %p47
      %p49 = scmp.ne.s32.totalorder %s38, %s39
      %p50 = scmp.eq.s32.totalorder %s18, 0
      %p51 = por %p49, %p50
      %p52 = scmp.ne.s32.totalorder %s38, %s39
      %p53 = scmp.eq.s32.totalorder %s19, 1
      %p54 = por %p52, %p53
      %p56 = scmp.ne.s32.totalorder %s39, %s55
      %p57 = scmp.eq.s32.totalorder %s19, 0
      %p58 = por %p56, %p57
      %s59 = ssub.s32 %s21, %s28
      %p60 = scmp.eq.s32.totalorder %s59, 0
      %s62 = sadd.s32 %s61, 1
      %s63 = scalar_select %p60, %s61, %s62
      %p66 = pneg %p60
      %p67 = scmp.eq.s32.totalorder %s13, 1
      %p68 = por %p66, %p67
      %p69 = scmp.ne.s32.totalorder %s61, %s64
      %p70 = scmp.eq.s32.totalorder %s13, 0
      %p71 = por %p69, %p70
      %p72 = scmp.ne.s32.totalorder %s61, %s64
      %p73 = scmp.eq.s32.totalorder %s18, 1
      %p74 = por %p72, %p73
      %p75 = scmp.ne.s32.totalorder %s64, %s65
      %p76 = scmp.eq.s32.totalorder %s18, 0
      %p77 = por %p75, %p76
      %p78 = scmp.ne.s32.totalorder %s64, %s65
      %p79 = scmp.eq.s32.totalorder %s19, 1
      %p80 = por %p78, %p79
      %p82 = scmp.ne.s32.totalorder %s65, %s81
      %p83 = scmp.eq.s32.totalorder %s19, 0
      %p84 = por %p82, %p83
      %s85 = ssub.s32 %s21, %s28
      %p86 = scmp.eq.s32.totalorder %s85, 0
      %s88 = sadd.s32 %s87, 1
      %s89 = scalar_select %p86, %s87, %s88
      %p92 = pneg %p86
      %p93 = scmp.eq.s32.totalorder %s13, 1
      %p94 = por %p92, %p93
      %p95 = scmp.ne.s32.totalorder %s87, %s90
      %p96 = scmp.eq.s32.totalorder %s13, 0
      %p97 = por %p95, %p96
      %p98 = scmp.ne.s32.totalorder %s87, %s90
      %p99 = scmp.eq.s32.totalorder %s18, 1
      %p100 = por %p98, %p99
      %p101 = scmp.ne.s32.totalorder %s90, %s91
      %p102 = scmp.eq.s32.totalorder %s18, 0
      %p103 = por %p101, %p102
      %p104 = scmp.ne.s32.totalorder %s90, %s91
      %p105 = scmp.eq.s32.totalorder %s19, 1
      %p106 = por %p104, %p105
      %p108 = scmp.ne.s32.totalorder %s91, %s107
      %p109 = scmp.eq.s32.totalorder %s19, 0
      %p110 = por %p108, %p109
      %s112 = sadd.s32 %s111, 1
      %p115 = scmp.eq.s32.totalorder %s13, 1
      %p116 = scmp.ne.s32.totalorder %s111, %s113
      %p117 = scmp.eq.s32.totalorder %s13, 0
      %p118 = por %p116, %p117
      %p119 = scmp.ne.s32.totalorder %s111, %s113
      %p120 = scmp.eq.s32.totalorder %s18, 1
      %p121 = por %p119, %p120
      %p122 = scmp.ne.s32.totalorder %s113, %s114
      %p123 = scmp.eq.s32.totalorder %s18, 0
      %p124 = por %p122, %p123
      %p125 = scmp.ne.s32.totalorder %s113, %s114
      %p126 = scmp.eq.s32.totalorder %s19, 1
      %p127 = por %p125, %p126
      %p129 = scmp.ne.s32.totalorder %s114, %s128
      %p130 = scmp.eq.s32.totalorder %s19, 0
      %p131 = por %p129, %p130
      %s132 = ssub.s32 %s20, %s32
      %p133 = scmp.eq.s32.totalorder %s132, 0
      %s135 = sadd.s32 %s134, 1
      %s136 = scalar_select %p133, %s134, %s135
      %p139 = pneg %p133
      %p140 = scmp.eq.s32.totalorder %s13, 1
      %p141 = por %p139, %p140
      %p142 = scmp.ne.s32.totalorder %s134, %s137
      %p143 = scmp.eq.s32.totalorder %s13, 0
      %p144 = por %p142, %p143
      %p145 = scmp.ne.s32.totalorder %s134, %s137
      %p146 = scmp.eq.s32.totalorder %s18, 1
      %p147 = por %p145, %p146
      %p148 = scmp.ne.s32.totalorder %s137, %s138
      %p149 = scmp.eq.s32.totalorder %s18, 0
      %p150 = por %p148, %p149
      %p151 = scmp.ne.s32.totalorder %s137, %s138
      %p152 = scmp.eq.s32.totalorder %s19, 1
      %p153 = por %p151, %p152
      %p155 = scmp.ne.s32.totalorder %s138, %s154
      %p156 = scmp.eq.s32.totalorder %s19, 0
      %p157 = por %p155, %p156
      %p158 = scmp.le.s32.totalorder 1, %s13
      %p159 = scmp.lt.s32.totalorder %s13, 3
      %p160 = pnand %p158, %p159
      %p161 = pneg %p160
      // Predicated region
      $region9: #{tpu_custom_call.1} parent=5 // pred_check
        _
      $region10: #{tpu_custom_call.1} parent=5 // pred_check_branch
        %163 = sbr.rel (%p160) target = $region12
      $region11: #{tpu_custom_call.1} parent=5 // pred_region
        %s164 = ssub.s32 %s13, 1
        // Predicated region
        $region13: #{tpu_custom_call.1} parent=11 // pred_check
          %p165 = pneg %p77
        $region14: #{tpu_custom_call.1} parent=11 // pred_check_branch
          %167 = sbr.rel (%p165) target = $region16
        $region15: #{tpu_custom_call.1} parent=11 // pred_region
          %p168 = scmp.lt.s32.totalorder %s23, 0
          %s169 = scalar_select %p168, %s23, 0
          %s170 = smul.addr %s169, 8
          %s171 = scalar_lea.vmem %s1, %s170
        $region16: #{tpu_custom_call.1} parent=11 // pred_fallthru
          _
        // Predicated region
        $region17: #{tpu_custom_call.1} parent=11 // pred_check
          %p172 = pneg %p103
        $region18: #{tpu_custom_call.1} parent=11 // pred_check_branch
          %174 = sbr.rel (%p172) target = $region20
        $region19: #{tpu_custom_call.1} parent=11 // pred_region
          %s175 = smul.u32 16, %s23
          %p176 = scmp.lt.s32.totalorder %s175, 15
          %s177 = scalar_select %p176, %s175, 15
          %s178 = smul.addr %s177, 8
          %s179 = scalar_lea.vmem %s2, %s178
          %s180 = smul.u32 16, %s23
        $region20: #{tpu_custom_call.1} parent=11 // pred_fallthru
          _
        // Predicated region
        $region21: #{tpu_custom_call.1} parent=11 // pred_check
          %p181 = pneg %p124
        $region22: #{tpu_custom_call.1} parent=11 // pred_check_branch
          %183 = sbr.rel (%p181) target = $region24
        $region23: #{tpu_custom_call.1} parent=11 // pred_region
          _
        $region24: #{tpu_custom_call.1} parent=11 // pred_fallthru
          _
      $region12: #{tpu_custom_call.1} parent=5 // pred_fallthru
        _
      %p184 = scmp.lt.s32.totalorder %s13, 2
      // Predicated region
      $region25: #{tpu_custom_call.1} parent=5 // pred_check
        %p185 = pneg %p184
      $region26: #{tpu_custom_call.1} parent=5 // pred_check_branch
        %187 = sbr.rel (%p185) target = $region28
      $region27: #{tpu_custom_call.1} parent=5 // pred_region
        // Predicated region
        $region29: #{tpu_custom_call.1} parent=27 // pred_check
          %p188 = pneg %p45
        $region30: #{tpu_custom_call.1} parent=27 // pred_check_branch
          %190 = sbr.rel (%p188) target = $region32
        $region31: #{tpu_custom_call.1} parent=27 // pred_region
          %p191 = scmp.lt.s32.totalorder %s20, 1
          %s192 = scalar_select %p191, %s20, 1
          %s193 = smul.addr %s192, 8
          %s194 = scalar_lea.vmem %s0, %s193
        $region32: #{tpu_custom_call.1} parent=27 // pred_fallthru
          _
      $region28: #{tpu_custom_call.1} parent=5 // pred_fallthru
        _
      %p195 = scmp.le.s32.totalorder 1, %s13
      %p196 = scmp.lt.s32.totalorder %s13, 3
      %p197 = pnand %p195, %p196
      %p198 = pneg %p197
      // Predicated region
      $region33: #{tpu_custom_call.1} parent=5 // pred_check
        _
      $region34: #{tpu_custom_call.1} parent=5 // pred_check_branch
        %200 = sbr.rel (%p197) target = $region36
      $region35: #{tpu_custom_call.1} parent=5 // pred_region
        %s201 = ssub.s32 %s13, 1
        %p202 = scmp.lt.s32.totalorder %s22, 1
        %s203 = scalar_select %p202, %s22, 1
        %s204 = smul.addr %s203, 8
        %s205 = scalar_lea.vmem %s0, %s204
        %p206 = pneg %p51
        %p207 = pneg %p48
        %p208 = scmp.lt.s32.totalorder %s23, 0
        %s209 = scalar_select %p208, %s23, 0
        %s210 = smul.addr %s209, 8
        %s211 = scalar_lea.vmem %s1, %s210
        %p212 = pneg %p77
        %p213 = pneg %p74
        %s214 = smul.u32 16, %s23
        %p215 = scmp.lt.s32.totalorder %s214, 15
        %s216 = scalar_select %p215, %s214, 15
        %s217 = smul.addr %s216, 8
        %s218 = scalar_lea.vmem %s2, %s217
        %p219 = pneg %p103
        %p220 = pneg %p100
        %p221 = pneg %p124
        %p222 = pneg %p121
        %p223 = pneg %p150
        %p224 = pneg %p147
        %s225 = sand.u32 %s137, 1
        %s226 = scalar_lea.sflag [#allocation3], %s225
        %s227 = sand.u32 %s137, 1
        %s228 = smul.addr %s227, 8
        %s229 = scalar_lea.vmem [#allocation2], %s228
        %p230 = scmp.lt.s32.totalorder %s22, 1
        %s231 = scalar_select %p230, %s22, 1
        %s232 = smul.addr %s231, 8
        %s233 = scalar_lea.vmem %s0, %s232
        %p234 = scmp.lt.s32.totalorder %s23, 0
        %s235 = scalar_select %p234, %s23, 0
        %s236 = smul.addr %s235, 8
        %s237 = scalar_lea.vmem %s1, %s236
        %s238 = smul.u32 16, %s23
        %p239 = scmp.lt.s32.totalorder %s238, 15
        %s240 = scalar_select %p239, %s238, 15
        %s241 = smul.addr %s240, 8
        %s242 = scalar_lea.vmem %s2, %s241
        %s243 = smul.u32 16, %s23
        %p244 = scmp.eq.s32.totalorder %s23, 0
        // Predicated region
        $region37: #{tpu_custom_call.1} parent=35 // pred_check
          %p245 = pneg %p244
        $region38: #{tpu_custom_call.1} parent=35 // pred_check_branch
          %247 = sbr.rel (%p245) target = $region40
        $region39: #{tpu_custom_call.1} parent=35 // pred_region
          %v248 = vld [vmem:[%s3] sm:$0x1]
          %v250 = vperm.slane %v248, 0
          %vm252 = vcmask 261120
          %253 = vst.msk [vmem:[%s229] sm:$0xff] %vm252, %v250
        $region40: #{tpu_custom_call.1} parent=35 // pred_fallthru
          _
        %v254 = vld [vmem:[%s233] sm:$0xff]
        %v255 = vld [vmem:[%s237] sm:$0xff]
        %v256 = vld [vmem:[%s237 + $0x8] sm:$0xff]
        %v257 = vld [vmem:[%s237 + $0x10] sm:$0xff]
        %v258 = vld [vmem:[%s237 + $0x18] sm:$0xff]
        %vm259 = vcmask 261120
        %v261 = vsel %vm259, %v254, 0
        %263 = vmatpush.msra.mxu0 0.0
        %264 = vmatpush.msra.mxu0 0.0
        %265 = vmatpush.msra.mxu0 0.0
        %266 = vmatpush.msra.mxu0 0.0
        %267 = vmatpush.msra.mxu0 0.0
        %268 = vmatpush.msra.mxu0 0.0
        %269 = vmatpush.msra.mxu0 0.0
        %270 = vmatpush.msra.mxu0 0.0
        %271 = vmatpush.msra.mxu0 0.0
        %272 = vmatpush.msra.mxu0 0.0
        %273 = vmatpush.msra.mxu0 0.0
        %274 = vmatpush.msra.mxu0 0.0
        %275 = vmatpush.msra.mxu0 %v258
        %276 = vmatpush.msra.mxu0 %v257
        %277 = vmatpush.msra.mxu0 %v256
        %278 = vmatpush.msra.mxu0 %v255
        %279 = vmatmul.f32.gmra.mxu0 %v261
        %v280 = vpop.f32.mrf.mxu0
        %v281 = vadd.f32 0.0, %v280
        %282 = vdwg.mxu0
        %v283 = vld [vmem:[%s229] sm:$0xff]
        %v284 = vld [vmem:[%s242] sm:$0xff]
        %v285 = vld [vmem:[%s242 + $0x8] sm:$0xff]
        %v286 = vld [vmem:[%s242 + $0x10] sm:$0xff]
        %v287 = vld [vmem:[%s242 + $0x18] sm:$0xff]
        %v288 = vld [vmem:[%s242 + $0x20] sm:$0xff]
        %v289 = vld [vmem:[%s242 + $0x28] sm:$0xff]
        %v290 = vld [vmem:[%s242 + $0x30] sm:$0xff]
        %v291 = vld [vmem:[%s242 + $0x38] sm:$0xff]
        %v292 = vld [vmem:[%s242 + $0x40] sm:$0xff]
        %v293 = vld [vmem:[%s242 + $0x48] sm:$0xff]
        %v294 = vld [vmem:[%s242 + $0x50] sm:$0xff]
        %v295 = vld [vmem:[%s242 + $0x58] sm:$0xff]
        %v296 = vld [vmem:[%s242 + $0x60] sm:$0xff]
        %v297 = vld [vmem:[%s242 + $0x68] sm:$0xff]
        %v298 = vld [vmem:[%s242 + $0x70] sm:$0xff]
        %v299 = vld [vmem:[%s242 + $0x78] sm:$0xff]
        %300 = vmatpush.msra.mxu0 %v299
        %301 = vmatpush.msra.mxu0 %v298
        %302 = vmatpush.msra.mxu0 %v297
        %303 = vmatpush.msra.mxu0 %v296
        %304 = vmatpush.msra.mxu0 %v295
        %305 = vmatpush.msra.mxu0 %v294
        %306 = vmatpush.msra.mxu0 %v293
        %307 = vmatpush.msra.mxu0 %v292
        %308 = vmatpush.msra.mxu0 %v291
        %309 = vmatpush.msra.mxu0 %v290
        %310 = vmatpush.msra.mxu0 %v289
        %311 = vmatpush.msra.mxu0 %v288
        %312 = vmatpush.msra.mxu0 %v287
        %313 = vmatpush.msra.mxu0 %v286
        %314 = vmatpush.msra.mxu0 %v285
        %315 = vmatpush.msra.mxu0 %v284
        %316 = vmatmul.f32.gmra.mxu0 %v281
        %v317 = vpop.f32.mrf.mxu0
        %v318 = vadd.f32 0.0, %v317
        %319 = vdwg.mxu0
        %v320 = vadd.f32 %v283, %v318
        %321 = vst.msk [vmem:[%s229] sm:$0xff] %vm259, %v320
        %s322 = sand.u32 %s137, 1
        %s323 = scalar_lea.sflag [#allocation3], %s322
        %s324 = sand.u32 %s137, 1
        %s325 = smul.addr %s324, 8
        %s326 = scalar_lea.vmem [#allocation2], %s325
        // Predicated region
        $region41: #{tpu_custom_call.1} parent=35 // pred_check
          %p327 = pneg %p147
        $region42: #{tpu_custom_call.1} parent=35 // pred_check_branch
          %329 = sbr.rel (%p327) target = $region44
        $region43: #{tpu_custom_call.1} parent=35 // pred_region
          %331 = vsyncadd %s323, 0
          %s332 = smul.addr %s22, 8
          %s333 = scalar_lea.hbm %s4, %s332
          %s335 = sshll.u32 %s326, 4
          %s336 = int_to_ptr.vmem [resolvable:$true] %s335
          %s337 = sshll.u32 %s333, 4
          %s338 = int_to_ptr.hbm [resolvable:$true] %s337
          %340 = dma.vmem_to_hbm [thread:$0]  %s336, 128, %s338, %s323
        $region44: #{tpu_custom_call.1} parent=35 // pred_fallthru
          _
      $region36: #{tpu_custom_call.1} parent=5 // pred_fallthru
        _
      %p341 = scmp.le.s32.totalorder 2, %s13
      // Predicated region
      $region45: #{tpu_custom_call.1} parent=5 // pred_check
        %p342 = pneg %p341
      $region46: #{tpu_custom_call.1} parent=5 // pred_check_branch
        %344 = sbr.rel (%p342) target = $region48
      $region47: #{tpu_custom_call.1} parent=5 // pred_region
        %s345 = ssub.s32 %s13, 2
        // Predicated region
        $region49: #{tpu_custom_call.1} parent=47 // pred_check
          %p346 = pneg %p153
        $region50: #{tpu_custom_call.1} parent=47 // pred_check_branch
          %348 = sbr.rel (%p346) target = $region52
        $region51: #{tpu_custom_call.1} parent=47 // pred_region
          %s349 = sand.u32 %s138, 1
          %s350 = scalar_lea.sflag [#allocation3], %s349
          %s351 = sand.u32 %s138, 1
          %s352 = smul.addr %s351, 8
          %s353 = scalar_lea.vmem [#allocation2], %s352
          %355 = dma.done %s350, 128
        $region52: #{tpu_custom_call.1} parent=47 // pred_fallthru
          _
      $region48: #{tpu_custom_call.1} parent=5 // pred_fallthru
        _
    $region6: #{tpu_custom_call.1} parent=1 // loop_footer
      %s17 = sadd.s32 1, %s13
    $region7: #{tpu_custom_call.1} parent=1 // loop_footer_branch
      %12 = sbr.rel target = $region3
    $region8: #{tpu_custom_call.1} parent=1 // loop_exit
      _
    %356 = vsyncpa [#allocation3], 1
    %s357 = scalar_lea.sflag [#allocation3], 1
    %358 = vsyncpa %s357, 1

</llo_original>
